<compile_context>
chip_gen: v7x
topology: tpu7x:2x2x1
jax: 0.10.0
libtpu: 0.0.40
codegen_flags: <defaults>
</compile_context>

<pallas_src>
import jax
import jax.numpy as jnp
from jax.experimental import pallas as pl
from jax.experimental.pallas import tpu as pltpu

_EPS = 1e-8
_VMEM_LIMIT_CAP = 48 << 20      # safe on every generation incl. v7x (64 MiB physical)
_FUSED_VMEM_BUDGET = 40 << 20   # if the fused step needs more than this -> two-pass
_SLAB_TARGET_BYTES = 1 << 20    # per-tensor block size target (amortize step overhead)


# ---------------------------------------------------------------------------
# Path A: fully fused single pass (1 HBM read + 1 HBM write per element).
# ---------------------------------------------------------------------------
def _fused_kernel(prev_ref, self_ref, next_ref, out_ref):
    """Blocks: inputs (TB, C, N); output (TB, 3, C, N)."""
    n = prev_ref.shape[-1]
    inv_n = jnp.float32(1.0 / n)
    eps = jnp.float32(_EPS)

    def descriptor(ref):
        # f32 accumulation; the f32 copy is only live inside this reduction.
        x = ref[...].astype(jnp.float32)                      # (TB, C, N)
        avg = jnp.sum(x, axis=-1, keepdims=True) * inv_n      # (TB, C, 1)
        mx = jnp.max(x, axis=-1, keepdims=True)               # (TB, C, 1)
        return avg, mx

    avg_p, max_p = descriptor(prev_ref)
    avg_s, max_s = descriptor(self_ref)
    avg_n, max_n = descriptor(next_ref)

    def pair_dot(a1, b1, a2, b2):
        # <concat([a1,a2]), concat([b1,b2])> over channels -> (TB, 1, 1)
        return jnp.sum(a1 * b1 + a2 * b2, axis=1, keepdims=True)

    dot_sp = pair_dot(avg_s, avg_p, max_s, max_p)
    dot_sn = pair_dot(avg_s, avg_n, max_s, max_n)
    nrm_p = jnp.maximum(jnp.sqrt(pair_dot(avg_p, avg_p, max_p, max_p)), eps)
    nrm_s = jnp.maximum(jnp.sqrt(pair_dot(avg_s, avg_s, max_s, max_s)), eps)
    nrm_n = jnp.maximum(jnp.sqrt(pair_dot(avg_n, avg_n, max_n, max_n)), eps)

    # torch cosine_similarity clamps each norm separately.
    sim_p = dot_sp * pl.reciprocal(nrm_s * nrm_p, approx=False)
    sim_n = dot_sn * pl.reciprocal(nrm_s * nrm_n, approx=False)
    sim_s = jnp.ones_like(sim_p)

    m = jnp.maximum(jnp.maximum(sim_p, sim_s), sim_n)
    e_p = jnp.exp(sim_p - m)
    e_s = jnp.exp(sim_s - m)
    e_n = jnp.exp(sim_n - m)
    inv_den = pl.reciprocal(e_p + e_s + e_n, approx=False)    # (TB, 1, 1)
    w_p = e_p * inv_den
    w_s = e_s * inv_den
    w_n = e_n * inv_den

    dt = out_ref.dtype
    # Three lane-dense slab stores; refs are re-read (no full f32 copies kept live).
    out_ref[:, 0, :, :] = (prev_ref[...].astype(jnp.float32) * w_p).astype(dt)
    out_ref[:, 1, :, :] = (self_ref[...].astype(jnp.float32) * w_s).astype(dt)
    out_ref[:, 2, :, :] = (next_ref[...].astype(jnp.float32) * w_n).astype(dt)


# ---------------------------------------------------------------------------
# Path B pass 1: N-tiled descriptor reduction (sum + max per channel).
# ---------------------------------------------------------------------------
def _descriptor_kernel(prev_ref, self_ref, next_ref, sum_ref, max_ref):
    """Blocks: inputs (1, C, TN); outputs (1, 3, C, 1) resident accumulators."""
    t = pl.program_id(1)

    @pl.when(t == 0)
    def _():
        sum_ref[...] = jnp.zeros_like(sum_ref)
        max_ref[...] = jnp.full_like(max_ref, -jnp.inf)

    for idx, ref in enumerate((prev_ref, self_ref, next_ref)):
        x = ref[0].astype(jnp.float32)                        # (C, TN)
        sum_ref[0, idx] = sum_ref[0, idx] + jnp.sum(x, axis=-1, keepdims=True)
        max_ref[0, idx] = jnp.maximum(max_ref[0, idx],
                                      jnp.max(x, axis=-1, keepdims=True))


# ---------------------------------------------------------------------------
# Path B pass 2: scale each slice by its per-batch weight (weights in SMEM).
# ---------------------------------------------------------------------------
def _scale_kernel(w_ref, prev_ref, self_ref, next_ref, out_ref):
    """w_ref: (B, 3) f32 in SMEM; inputs (1, C, TN); output (1, 3, C, TN)."""
    b = pl.program_id(0)
    dt = out_ref.dtype
    out_ref[0, 0] = (prev_ref[0].astype(jnp.float32) * w_ref[b, 0]).astype(dt)
    out_ref[0, 1] = (self_ref[0].astype(jnp.float32) * w_ref[b, 1]).astype(dt)
    out_ref[0, 2] = (next_ref[0].astype(jnp.float32) * w_ref[b, 2]).astype(dt)


# ---------------------------------------------------------------------------
# Wrapper / dispatch
# ---------------------------------------------------------------------------
def _choose_batch_block(batch, slab_bytes, target=_SLAB_TARGET_BYTES):
    """Largest divisor of `batch` whose block fits the target and leaves >=2 steps."""
    best = 1
    for d in range(1, batch + 1):
        if batch % d:
            continue
        if d * slab_bytes > target:
            continue
        if batch > 1 and batch // d < 2:   # keep both v7x TensorCores busy
            continue
        best = d
    return best


def _choose_spatial_tile(n, c, itemsize, target=_SLAB_TARGET_BYTES):
    """Largest multiple-of-128 divisor of n whose (C, TN) slab fits the target."""
    if n % 128 != 0:
        return n   # see TODO(synk) at top of file
    best = None
    for k in range(1, n // 128 + 1):
        tn = 128 * k
        if n % tn:
            continue
        if c * tn * itemsize <= target:
            best = tn
    return best if best is not None else 128


def cosine_dynamic_fusion(feat_prev, feat_self, feat_next, *, force_two_pass=False):
    """feat_*: (B, C, H, W) -> fused (B, 3*C, H, W). 'avgmax' pooling."""
    B, C, H, W = feat_self.shape
    N = H * W
    dtype = feat_self.dtype
    itemsize = jnp.dtype(dtype).itemsize

    fp = feat_prev.reshape(B, C, N)
    fs = feat_self.reshape(B, C, N)
    fn = feat_next.reshape(B, C, N)

    slab_bytes = C * N * itemsize
    # fused step: (3 in + 3 out slabs) double-buffered + ~4 f32-slab temporaries
    fused_step_bytes = 12 * slab_bytes + 4 * C * N * 4
    use_fused = (not force_two_pass) and fused_step_bytes <= _FUSED_VMEM_BUDGET

    if use_fused:
        tb = _choose_batch_block(B, slab_bytes)
        step_bytes = tb * fused_step_bytes
        vmem_limit = int(min(max(32 << 20, int(1.25 * step_bytes)), _VMEM_LIMIT_CAP))
        out = pl.pallas_call(
            _fused_kernel,
            out_shape=jax.ShapeDtypeStruct((B, 3, C, N), dtype),
            grid=(B // tb,),
            in_specs=[pl.BlockSpec((tb, C, N), lambda i: (i, 0, 0))] * 3,
            out_specs=pl.BlockSpec((tb, 3, C, N), lambda i: (i, 0, 0, 0)),
            compiler_params=pltpu.CompilerParams(
                dimension_semantics=("parallel",),
                vmem_limit_bytes=vmem_limit),
            cost_estimate=pl.CostEstimate(
                flops=9 * B * C * N,
                transcendentals=6 * B,
                bytes_accessed=6 * B * C * N * itemsize),
        )(fp, fs, fn)
        return out.reshape(B, 3 * C, H, W)

    # ---------------- Two-pass fallback (large C*N slabs) ----------------
    tn = _choose_spatial_tile(N, C, itemsize)
    nt = N // tn

    pass1_step = 6 * C * tn * itemsize + 2 * C * tn * 4
    vmem_limit1 = int(min(max(32 << 20, 2 * pass1_step), _VMEM_LIMIT_CAP))
    sums, maxes = pl.pallas_call(
        _descriptor_kernel,
        out_shape=(jax.ShapeDtypeStruct((B, 3, C, 1), jnp.float32),
                   jax.ShapeDtypeStruct((B, 3, C, 1), jnp.float32)),
        grid=(B, nt),
        in_specs=[pl.BlockSpec((1, C, tn), lambda b, t: (b, 0, t))] * 3,
        out_specs=(pl.BlockSpec((1, 3, C, 1), lambda b, t: (b, 0, 0, 0)),
                   pl.BlockSpec((1, 3, C, 1), lambda b, t: (b, 0, 0, 0))),
        compiler_params=pltpu.CompilerParams(
            dimension_semantics=("parallel", "arbitrary"),
            vmem_limit_bytes=vmem_limit1),
        cost_estimate=pl.CostEstimate(
            flops=6 * B * C * N,
            transcendentals=0,
            bytes_accessed=3 * B * C * N * itemsize),
    )(fp, fs, fn)

    # Tiny cosine + softmax weight math in plain XLA (negligible).
    avg = sums[..., 0] * jnp.float32(1.0 / N)          # (B, 3, C)
    mx = maxes[..., 0]                                 # (B, 3, C)
    desc = jnp.concatenate([avg, mx], axis=-1)         # (B, 3, 2C)
    d_prev, d_self, d_next = desc[:, 0], desc[:, 1], desc[:, 2]

    def cos(a, b):
        num = jnp.sum(a * b, axis=-1)
        na = jnp.maximum(jnp.sqrt(jnp.sum(a * a, axis=-1)), _EPS)
        nb = jnp.maximum(jnp.sqrt(jnp.sum(b * b, axis=-1)), _EPS)
        return num / (na * nb)

    sim_p = cos(d_self, d_prev)
    sim_n = cos(d_self, d_next)
    sim_s = jnp.ones_like(sim_p)
    weights = jax.nn.softmax(jnp.stack([sim_p, sim_s, sim_n], axis=1), axis=1)
    weights = weights.astype(jnp.float32)               # (B, 3), lives in SMEM below

    pass2_step = 12 * C * tn * itemsize + 4 * C * tn * 4
    vmem_limit2 = int(min(max(32 << 20, 2 * pass2_step), _VMEM_LIMIT_CAP))
    out = pl.pallas_call(
        _scale_kernel,
        out_shape=jax.ShapeDtypeStruct((B, 3, C, N), dtype),
        grid=(B, nt),
        in_specs=[pl.BlockSpec(memory_space=pltpu.MemorySpace.SMEM),
                  pl.BlockSpec((1, C, tn), lambda b, t: (b, 0, t)),
                  pl.BlockSpec((1, C, tn), lambda b, t: (b, 0, t)),
                  pl.BlockSpec((1, C, tn), lambda b, t: (b, 0, t))],
        out_specs=pl.BlockSpec((1, 3, C, tn), lambda b, t: (b, 0, 0, t)),
        compiler_params=pltpu.CompilerParams(
            dimension_semantics=("parallel", "parallel"),
            vmem_limit_bytes=vmem_limit2),
        cost_estimate=pl.CostEstimate(
            flops=3 * B * C * N,
            transcendentals=0,
            bytes_accessed=6 * B * C * N * itemsize),
    )(weights, fp, fs, fn)
    return out.reshape(B, 3 * C, H, W)


# ---------------------------------------------------------------------------
# Pure-JAX reference (mirrors the PyTorch forward, 'avgmax' pooling).
# ---------------------------------------------------------------------------
def reference(feat_prev, feat_self, feat_next):
    B, C, H, W = feat_self.shape
    eps = _EPS

    def desc(x):
        a = jnp.mean(x, axis=(2, 3))
        m = jnp.max(x, axis=(2, 3))
        return jnp.concatenate([a, m], axis=1)          # (B, 2C)

    dp, ds, dn = desc(feat_prev), desc(feat_self), desc(feat_next)

    def cos(a, b):
        na = jnp.maximum(jnp.linalg.norm(a, axis=1), eps)
        nb = jnp.maximum(jnp.linalg.norm(b, axis=1), eps)
        return jnp.sum(a * b, axis=1) / (na * nb)

    sim_p = cos(ds, dp)
    sim_n = cos(ds, dn)
    sim_s = jnp.ones_like(sim_p)
    w = jax.nn.softmax(jnp.stack([sim_p, sim_s, sim_n], axis=1), axis=1)
    w_p = w[:, 0].reshape(B, 1, 1, 1)
    w_s = w[:, 1].reshape(B, 1, 1, 1)
    w_n = w[:, 2].reshape(B, 1, 1, 1)
    return jnp.concatenate(
        [feat_prev * w_p, feat_self * w_s, feat_next * w_n], axis=1)


if __name__ == "__main__":
    def run_case(B, C, H, W, force_two_pass=False):
        key = jax.random.PRNGKey(0)
        kp, ks, kn = jax.random.split(key, 3)
        feat_prev = jax.random.normal(kp, (B, C, H, W), jnp.float32)
        feat_self = jax.random.normal(ks, (B, C, H, W), jnp.float32)
        feat_next = jax.random.normal(kn, (B, C, H, W), jnp.float32)

        fused = cosine_dynamic_fusion(feat_prev, feat_self, feat_next,
                                      force_two_pass=force_two_pass)
        fused = jax.block_until_ready(fused)
        fused_ref = reference(feat_prev, feat_self, feat_next)

        assert fused.shape == (B, 3 * C, H, W)
        assert jnp.allclose(fused, fused_ref, atol=1e-5, rtol=1e-5), (
            f"fusion mismatch (B={B}, two_pass={force_two_pass})")

    run_case(2, 4, 16, 16)                        # fused path, TB=1, 2 grid steps
    run_case(4, 4, 16, 16)                        # fused path with batch blocking TB=2
    run_case(2, 4, 16, 16, force_two_pass=True)   # two-pass (descriptor + scale) path
    print("KERNEL_OK")
</pallas_src>

<mosaic_0001>
module attributes {stable_mosaic.version = 11 : i64} {
  func.func @_fused_kernel(%arg0: i32, %arg1: memref<1x4x256xf32, #tpu.memory_space<vmem>>, %arg2: memref<1x4x256xf32, #tpu.memory_space<vmem>>, %arg3: memref<1x4x256xf32, #tpu.memory_space<vmem>>, %arg4: memref<1x3x4x256xf32, #tpu.memory_space<vmem>>) attributes {dimension_semantics = [#tpu.dimension_semantics<parallel>], iteration_bounds = array<i64: 2>, scalar_prefetch = 0 : i64, scratch_operands = 0 : i64, tpu.core_type = #tpu.core_type<tc>, window_params = [{transform_indices = @transform_0, window_bounds = array<i64: 1, 4, 256>}, {transform_indices = @transform_1, window_bounds = array<i64: 1, 4, 256>}, {transform_indices = @transform_2, window_bounds = array<i64: 1, 4, 256>}, {transform_indices = @transform_3, window_bounds = array<i64: 1, 3, 4, 256>}]} {
    %c0 = arith.constant 0 : index
    %c0_0 = arith.constant 0 : index
    %c0_1 = arith.constant 0 : index
    %0 = vector.load %arg1[%c0, %c0_0, %c0_1] : memref<1x4x256xf32, #tpu.memory_space<vmem>>, vector<1x4x256xf32>
    %cst = arith.constant dense<0.000000e+00> : vector<1x4xf32>
    %1 = vector.multi_reduction <add>, %0, %cst [2] : vector<1x4x256xf32> to vector<1x4xf32>
    %2 = vector.shape_cast %1 : vector<1x4xf32> to vector<1x4x1xf32>
    %cst_2 = arith.constant 3.906250e-03 : f32
    %3 = vector.broadcast %cst_2 : f32 to vector<1x4x1xf32>
    %4 = arith.mulf %2, %3 : vector<1x4x1xf32>
    %cst_3 = arith.constant dense<0xFF800000> : vector<1x4xf32>
    %5 = vector.multi_reduction <maximumf>, %0, %cst_3 [2] : vector<1x4x256xf32> to vector<1x4xf32>
    %6 = vector.shape_cast %5 : vector<1x4xf32> to vector<1x4x1xf32>
    %c0_4 = arith.constant 0 : index
    %c0_5 = arith.constant 0 : index
    %c0_6 = arith.constant 0 : index
    %7 = vector.load %arg2[%c0_4, %c0_5, %c0_6] : memref<1x4x256xf32, #tpu.memory_space<vmem>>, vector<1x4x256xf32>
    %cst_7 = arith.constant dense<0.000000e+00> : vector<1x4xf32>
    %8 = vector.multi_reduction <add>, %7, %cst_7 [2] : vector<1x4x256xf32> to vector<1x4xf32>
    %9 = vector.shape_cast %8 : vector<1x4xf32> to vector<1x4x1xf32>
    %cst_8 = arith.constant 3.906250e-03 : f32
    %10 = vector.broadcast %cst_8 : f32 to vector<1x4x1xf32>
    %11 = arith.mulf %9, %10 : vector<1x4x1xf32>
    %cst_9 = arith.constant dense<0xFF800000> : vector<1x4xf32>
    %12 = vector.multi_reduction <maximumf>, %7, %cst_9 [2] : vector<1x4x256xf32> to vector<1x4xf32>
    %13 = vector.shape_cast %12 : vector<1x4xf32> to vector<1x4x1xf32>
    %c0_10 = arith.constant 0 : index
    %c0_11 = arith.constant 0 : index
    %c0_12 = arith.constant 0 : index
    %14 = vector.load %arg3[%c0_10, %c0_11, %c0_12] : memref<1x4x256xf32, #tpu.memory_space<vmem>>, vector<1x4x256xf32>
    %cst_13 = arith.constant dense<0.000000e+00> : vector<1x4xf32>
    %15 = vector.multi_reduction <add>, %14, %cst_13 [2] : vector<1x4x256xf32> to vector<1x4xf32>
    %16 = vector.shape_cast %15 : vector<1x4xf32> to vector<1x4x1xf32>
    %cst_14 = arith.constant 3.906250e-03 : f32
    %17 = vector.broadcast %cst_14 : f32 to vector<1x4x1xf32>
    %18 = arith.mulf %16, %17 : vector<1x4x1xf32>
    %cst_15 = arith.constant dense<0xFF800000> : vector<1x4xf32>
    %19 = vector.multi_reduction <maximumf>, %14, %cst_15 [2] : vector<1x4x256xf32> to vector<1x4xf32>
    %20 = vector.shape_cast %19 : vector<1x4xf32> to vector<1x4x1xf32>
    %21 = arith.mulf %11, %4 : vector<1x4x1xf32>
    %22 = arith.mulf %13, %6 : vector<1x4x1xf32>
    %23 = arith.addf %21, %22 : vector<1x4x1xf32>
    %cst_16 = arith.constant dense<0.000000e+00> : vector<1x1xf32>
    %24 = vector.multi_reduction <add>, %23, %cst_16 [1] : vector<1x4x1xf32> to vector<1x1xf32>
    %25 = vector.shape_cast %24 : vector<1x1xf32> to vector<1x1x1xf32>
    %26 = arith.mulf %11, %18 : vector<1x4x1xf32>
    %27 = arith.mulf %13, %20 : vector<1x4x1xf32>
    %28 = arith.addf %26, %27 : vector<1x4x1xf32>
    %cst_17 = arith.constant dense<0.000000e+00> : vector<1x1xf32>
    %29 = vector.multi_reduction <add>, %28, %cst_17 [1] : vector<1x4x1xf32> to vector<1x1xf32>
    %30 = vector.shape_cast %29 : vector<1x1xf32> to vector<1x1x1xf32>
    %31 = arith.mulf %4, %4 : vector<1x4x1xf32>
    %32 = arith.mulf %6, %6 : vector<1x4x1xf32>
    %33 = arith.addf %31, %32 : vector<1x4x1xf32>
    %cst_18 = arith.constant dense<0.000000e+00> : vector<1x1xf32>
    %34 = vector.multi_reduction <add>, %33, %cst_18 [1] : vector<1x4x1xf32> to vector<1x1xf32>
    %35 = vector.shape_cast %34 : vector<1x1xf32> to vector<1x1x1xf32>
    %36 = math.sqrt %35 : vector<1x1x1xf32>
    %cst_19 = arith.constant 9.99999993E-9 : f32
    %37 = vector.broadcast %cst_19 : f32 to vector<1x1x1xf32>
    %38 = arith.maximumf %36, %37 : vector<1x1x1xf32>
    %39 = arith.mulf %11, %11 : vector<1x4x1xf32>
    %40 = arith.mulf %13, %13 : vector<1x4x1xf32>
    %41 = arith.addf %39, %40 : vector<1x4x1xf32>
    %cst_20 = arith.constant dense<0.000000e+00> : vector<1x1xf32>
    %42 = vector.multi_reduction <add>, %41, %cst_20 [1] : vector<1x4x1xf32> to vector<1x1xf32>
    %43 = vector.shape_cast %42 : vector<1x1xf32> to vector<1x1x1xf32>
    %44 = math.sqrt %43 : vector<1x1x1xf32>
    %cst_21 = arith.constant 9.99999993E-9 : f32
    %45 = vector.broadcast %cst_21 : f32 to vector<1x1x1xf32>
    %46 = arith.maximumf %44, %45 : vector<1x1x1xf32>
    %47 = arith.mulf %18, %18 : vector<1x4x1xf32>
    %48 = arith.mulf %20, %20 : vector<1x4x1xf32>
    %49 = arith.addf %47, %48 : vector<1x4x1xf32>
    %cst_22 = arith.constant dense<0.000000e+00> : vector<1x1xf32>
    %50 = vector.multi_reduction <add>, %49, %cst_22 [1] : vector<1x4x1xf32> to vector<1x1xf32>
    %51 = vector.shape_cast %50 : vector<1x1xf32> to vector<1x1x1xf32>
    %52 = math.sqrt %51 : vector<1x1x1xf32>
    %cst_23 = arith.constant 9.99999993E-9 : f32
    %53 = vector.broadcast %cst_23 : f32 to vector<1x1x1xf32>
    %54 = arith.maximumf %52, %53 : vector<1x1x1xf32>
    %55 = arith.mulf %46, %38 : vector<1x1x1xf32>
    %56 = tpu.reciprocal %55 : vector<1x1x1xf32> -> vector<1x1x1xf32>
    %57 = arith.mulf %25, %56 : vector<1x1x1xf32>
    %58 = arith.mulf %46, %54 : vector<1x1x1xf32>
    %59 = tpu.reciprocal %58 : vector<1x1x1xf32> -> vector<1x1x1xf32>
    %60 = arith.mulf %30, %59 : vector<1x1x1xf32>
    %cst_24 = arith.constant 1.000000e+00 : f32
    %61 = vector.broadcast %cst_24 : f32 to vector<1x1x1xf32>
    %62 = arith.maximumf %57, %61 : vector<1x1x1xf32>
    %63 = arith.maximumf %62, %60 : vector<1x1x1xf32>
    %64 = arith.subf %57, %63 : vector<1x1x1xf32>
    %65 = math.exp %64 : vector<1x1x1xf32>
    %66 = arith.subf %61, %63 : vector<1x1x1xf32>
    %67 = math.exp %66 : vector<1x1x1xf32>
    %68 = arith.subf %60, %63 : vector<1x1x1xf32>
    %69 = math.exp %68 : vector<1x1x1xf32>
    %70 = arith.addf %65, %67 : vector<1x1x1xf32>
    %71 = arith.addf %70, %69 : vector<1x1x1xf32>
    %72 = tpu.reciprocal %71 : vector<1x1x1xf32> -> vector<1x1x1xf32>
    %73 = arith.mulf %65, %72 : vector<1x1x1xf32>
    %74 = arith.mulf %67, %72 : vector<1x1x1xf32>
    %75 = arith.mulf %69, %72 : vector<1x1x1xf32>
    %c0_25 = arith.constant 0 : index
    %c0_26 = arith.constant 0 : index
    %c0_27 = arith.constant 0 : index
    %76 = vector.load %arg1[%c0_25, %c0_26, %c0_27] : memref<1x4x256xf32, #tpu.memory_space<vmem>>, vector<1x4x256xf32>
    %77 = vector.broadcast %73 : vector<1x1x1xf32> to vector<1x4x256xf32>
    %78 = arith.mulf %76, %77 : vector<1x4x256xf32>
    %c0_28 = arith.constant 0 : index
    %c0_29 = arith.constant 0 : index
    %c0_30 = arith.constant 0 : index
    %c0_31 = arith.constant 0 : index
    %79 = vector.load %arg4[%c0_28, %c0_29, %c0_30, %c0_31] : memref<1x3x4x256xf32, #tpu.memory_space<vmem>>, vector<1x1x4x256xf32>
    %80 = vector.shape_cast %79 : vector<1x1x4x256xf32> to vector<1x4x256xf32>
    %81 = vector.shape_cast %78 : vector<1x4x256xf32> to vector<1x1x4x256xf32>
    tpu.vector_store %arg4[%c0_28, %c0_29, %c0_30, %c0_31], %81 {strides = array<i32>} : memref<1x3x4x256xf32, #tpu.memory_space<vmem>>, vector<1x1x4x256xf32>,
    %c0_32 = arith.constant 0 : index
    %c0_33 = arith.constant 0 : index
    %c0_34 = arith.constant 0 : index
    %82 = vector.load %arg2[%c0_32, %c0_33, %c0_34] : memref<1x4x256xf32, #tpu.memory_space<vmem>>, vector<1x4x256xf32>
    %83 = vector.broadcast %74 : vector<1x1x1xf32> to vector<1x4x256xf32>
    %84 = arith.mulf %82, %83 : vector<1x4x256xf32>
    %c0_35 = arith.constant 0 : index
    %c1 = arith.constant 1 : index
    %c0_36 = arith.constant 0 : index
    %c0_37 = arith.constant 0 : index
    %85 = vector.load %arg4[%c0_35, %c1, %c0_36, %c0_37] : memref<1x3x4x256xf32, #tpu.memory_space<vmem>>, vector<1x1x4x256xf32>
    %86 = vector.shape_cast %85 : vector<1x1x4x256xf32> to vector<1x4x256xf32>
    %87 = vector.shape_cast %84 : vector<1x4x256xf32> to vector<1x1x4x256xf32>
    tpu.vector_store %arg4[%c0_35, %c1, %c0_36, %c0_37], %87 {strides = array<i32>} : memref<1x3x4x256xf32, #tpu.memory_space<vmem>>, vector<1x1x4x256xf32>,
    %c0_38 = arith.constant 0 : index
    %c0_39 = arith.constant 0 : index
    %c0_40 = arith.constant 0 : index
    %88 = vector.load %arg3[%c0_38, %c0_39, %c0_40] : memref<1x4x256xf32, #tpu.memory_space<vmem>>, vector<1x4x256xf32>
    %89 = vector.broadcast %75 : vector<1x1x1xf32> to vector<1x4x256xf32>
    %90 = arith.mulf %88, %89 : vector<1x4x256xf32>
    %c0_41 = arith.constant 0 : index
    %c2 = arith.constant 2 : index
    %c0_42 = arith.constant 0 : index
    %c0_43 = arith.constant 0 : index
    %91 = vector.load %arg4[%c0_41, %c2, %c0_42, %c0_43] : memref<1x3x4x256xf32, #tpu.memory_space<vmem>>, vector<1x1x4x256xf32>
    %92 = vector.shape_cast %91 : vector<1x1x4x256xf32> to vector<1x4x256xf32>
    %93 = vector.shape_cast %90 : vector<1x4x256xf32> to vector<1x1x4x256xf32>
    tpu.vector_store %arg4[%c0_41, %c2, %c0_42, %c0_43], %93 {strides = array<i32>} : memref<1x3x4x256xf32, #tpu.memory_space<vmem>>, vector<1x1x4x256xf32>,
    return
  }
  func.func @transform_0(%arg0: i32) -> (i32, i32, i32) {
    %c0_i32 = arith.constant 0 : i32
    %c0_i32_0 = arith.constant 0 : i32
    %c0_i32_1 = arith.constant 0 : i32
    return %arg0, %c0_i32, %c0_i32_0 : i32, i32, i32
  }
  func.func @transform_1(%arg0: i32) -> (i32, i32, i32) {
    %c0_i32 = arith.constant 0 : i32
    %c0_i32_0 = arith.constant 0 : i32
    %c0_i32_1 = arith.constant 0 : i32
    return %arg0, %c0_i32, %c0_i32_0 : i32, i32, i32
  }
  func.func @transform_2(%arg0: i32) -> (i32, i32, i32) {
    %c0_i32 = arith.constant 0 : i32
    %c0_i32_0 = arith.constant 0 : i32
    %c0_i32_1 = arith.constant 0 : i32
    return %arg0, %c0_i32, %c0_i32_0 : i32, i32, i32
  }
  func.func @transform_3(%arg0: i32) -> (i32, i32, i32, i32) {
    %c0_i32 = arith.constant 0 : i32
    %c0_i32_0 = arith.constant 0 : i32
    %c0_i32_1 = arith.constant 0 : i32
    %c0_i32_2 = arith.constant 0 : i32
    return %arg0, %c0_i32, %c0_i32_0, %c0_i32_1 : i32, i32, i32, i32
  }
}

</mosaic_0001>

<llo_original>
// kernel: tpu_custom_call.1
$region0: #{tpu_custom_call.1}
  #allocation0 [shape = 'u32[]', space=smem, size = 0x4, offset = 0x4, fixed_abs, tag = 'smem constant byte address 0x4 - core index']
  #allocation1 [shape = 'u32[144,128]{1,0:T(1,128)}', space=vmem, size = 0x12000, scoped, tag = 'internal scratch']
  %s0 = inlined_call_operand.hbm [shape: f32[2,4,256], index: 0, kind: input, shape index: {}]
  %s1 = inlined_call_operand.hbm [shape: f32[2,4,256], index: 1, kind: input, shape index: {}]
  %s2 = inlined_call_operand.hbm [shape: f32[2,4,256], index: 2, kind: input, shape index: {}]
  %s3 = inlined_call_operand.hbm [shape: f32[2,3,4,256], index: 3, kind: output, shape index: {}]
  %s4 = sld [smem:[#allocation0]]
  $region57: #{tpu_custom_call.1} parent=0
    _
  %s6 = ssub.s32 1, %s4
  %s7 = scalar_select 0, %s6, %s4
  $region1: #{tpu_custom_call.1} parent=0
    #allocation2 [shape = 'u8[8192]{0}', space=vmem, size = 0x2000, scoped, tag = 'input window, operand 0']
    #allocation3 [shape = 's32[2]{0}', space=sflag, size = 0x8, scoped, tag = 'scoped memory for tpu_custom_call.1']
    #allocation4 [shape = 's32[2]{0}', space=sflag, size = 0x8, scoped, tag = 'scoped memory for tpu_custom_call.1']
    #allocation5 [shape = 'u8[8192]{0}', space=vmem, size = 0x2000, scoped, tag = 'input window, operand 1']
    #allocation6 [shape = 's32[2]{0}', space=sflag, size = 0x8, scoped, tag = 'scoped memory for tpu_custom_call.1']
    #allocation7 [shape = 'u8[8192]{0}', space=vmem, size = 0x2000, scoped, tag = 'input window, operand 2']
    #allocation8 [shape = 'u8[24576]{0}', space=vmem, size = 0x6000, scoped, tag = 'output window, operand 0']
    %8 = vsyncpa [#allocation3], 0
    %s9 = scalar_lea.sflag [#allocation3], 1
    %10 = vsyncpa %s9, 0
    %11 = vsyncpa [#allocation6], 0
    %s12 = scalar_lea.sflag [#allocation6], 1
    %13 = vsyncpa %s12, 0
    %14 = vsyncpa [#allocation4], 0
    %s15 = scalar_lea.sflag [#allocation4], 1
    %16 = vsyncpa %s15, 0
    loop: start=0, step=1, limit=4
    $region2: #{tpu_custom_call.1} parent=1 // loop_pre_header
      _
    $region3: #{tpu_custom_call.1} parent=1 // loop_header
      %s18 = sphi 0, %s22
      %p19 = scmp.ge.s32.totalorder %s18, 4
      %s28 = sphi 0, %s30
      %s31 = sphi 0, %s28
      %s32 = sphi 0, %s31
      %s48 = sphi 0, %s32
      %s54 = sphi 0, %s56
      %s57 = sphi 0, %s54
      %s58 = sphi 0, %s57
      %s74 = sphi 0, %s58
      %s80 = sphi 0, %s82
      %s83 = sphi 0, %s80
      %s84 = sphi 0, %s83
      %s100 = sphi 0, %s84
      %s106 = sphi 0, %s108
      %s109 = sphi 0, %s106
      %s110 = sphi 0, %s109
      %s126 = sphi 0, %s110
    $region4: #{tpu_custom_call.1} parent=1 // loop_header_branch
      %21 = sbr.rel (%p19) target = $region8
    $region5: #{tpu_custom_call.1} parent=1 // loop_body
      %s23 = ssub.s32 %s18, 1
      %s24 = ssub.s32 %s18, 2
      %s25 = sadd.s32 %s18, 1
      %s26 = ssub.s32 %s18, %s25
      %p27 = scmp.eq.s32.totalorder %s26, 0
      %s29 = sadd.s32 %s28, 1
      %s30 = scalar_select %p27, %s28, %s29
      %p33 = pneg %p27
      %p34 = scmp.eq.s32.totalorder %s18, 1
      %p35 = por %p33, %p34
      %p36 = scmp.ne.s32.totalorder %s28, %s31
      %p37 = scmp.eq.s32.totalorder %s18, 0
      %p38 = por %p36, %p37
      %p39 = scmp.ne.s32.totalorder %s28, %s31
      %p40 = scmp.eq.s32.totalorder %s23, 1
      %p41 = por %p39, %p40
      %p42 = scmp.ne.s32.totalorder %s31, %s32
      %p43 = scmp.eq.s32.totalorder %s23, 0
      %p44 = por %p42, %p43
      %p45 = scmp.ne.s32.totalorder %s31, %s32
      %p46 = scmp.eq.s32.totalorder %s24, 1
      %p47 = por %p45, %p46
      %p49 = scmp.ne.s32.totalorder %s32, %s48
      %p50 = scmp.eq.s32.totalorder %s24, 0
      %p51 = por %p49, %p50
      %s52 = ssub.s32 %s18, %s25
      %p53 = scmp.eq.s32.totalorder %s52, 0
      %s55 = sadd.s32 %s54, 1
      %s56 = scalar_select %p53, %s54, %s55
      %p59 = pneg %p53
      %p60 = scmp.eq.s32.totalorder %s18, 1
      %p61 = por %p59, %p60
      %p62 = scmp.ne.s32.totalorder %s54, %s57
      %p63 = scmp.eq.s32.totalorder %s18, 0
      %p64 = por %p62, %p63
      %p65 = scmp.ne.s32.totalorder %s54, %s57
      %p66 = scmp.eq.s32.totalorder %s23, 1
      %p67 = por %p65, %p66
      %p68 = scmp.ne.s32.totalorder %s57, %s58
      %p69 = scmp.eq.s32.totalorder %s23, 0
      %p70 = por %p68, %p69
      %p71 = scmp.ne.s32.totalorder %s57, %s58
      %p72 = scmp.eq.s32.totalorder %s24, 1
      %p73 = por %p71, %p72
      %p75 = scmp.ne.s32.totalorder %s58, %s74
      %p76 = scmp.eq.s32.totalorder %s24, 0
      %p77 = por %p75, %p76
      %s78 = ssub.s32 %s18, %s25
      %p79 = scmp.eq.s32.totalorder %s78, 0
      %s81 = sadd.s32 %s80, 1
      %s82 = scalar_select %p79, %s80, %s81
      %p85 = pneg %p79
      %p86 = scmp.eq.s32.totalorder %s18, 1
      %p87 = por %p85, %p86
      %p88 = scmp.ne.s32.totalorder %s80, %s83
      %p89 = scmp.eq.s32.totalorder %s18, 0
      %p90 = por %p88, %p89
      %p91 = scmp.ne.s32.totalorder %s80, %s83
      %p92 = scmp.eq.s32.totalorder %s23, 1
      %p93 = por %p91, %p92
      %p94 = scmp.ne.s32.totalorder %s83, %s84
      %p95 = scmp.eq.s32.totalorder %s23, 0
      %p96 = por %p94, %p95
      %p97 = scmp.ne.s32.totalorder %s83, %s84
      %p98 = scmp.eq.s32.totalorder %s24, 1
      %p99 = por %p97, %p98
      %p101 = scmp.ne.s32.totalorder %s84, %s100
      %p102 = scmp.eq.s32.totalorder %s24, 0
      %p103 = por %p101, %p102
      %s104 = ssub.s32 %s18, %s25
      %p105 = scmp.eq.s32.totalorder %s104, 0
      %s107 = sadd.s32 %s106, 1
      %s108 = scalar_select %p105, %s106, %s107
      %p111 = pneg %p105
      %p112 = scmp.eq.s32.totalorder %s18, 1
      %p113 = por %p111, %p112
      %p114 = scmp.ne.s32.totalorder %s106, %s109
      %p115 = scmp.eq.s32.totalorder %s18, 0
      %p116 = por %p114, %p115
      %p117 = scmp.ne.s32.totalorder %s106, %s109
      %p118 = scmp.eq.s32.totalorder %s23, 1
      %p119 = por %p117, %p118
      %p120 = scmp.ne.s32.totalorder %s109, %s110
      %p121 = scmp.eq.s32.totalorder %s23, 0
      %p122 = por %p120, %p121
      %p123 = scmp.ne.s32.totalorder %s109, %s110
      %p124 = scmp.eq.s32.totalorder %s24, 1
      %p125 = por %p123, %p124
      %p127 = scmp.ne.s32.totalorder %s110, %s126
      %p128 = scmp.eq.s32.totalorder %s24, 0
      %p129 = por %p127, %p128
      %p130 = scmp.le.s32.totalorder 1, %s18
      %p131 = scmp.lt.s32.totalorder %s18, 3
      %p132 = pnand %p130, %p131
      %p133 = pneg %p132
      // Predicated region
      $region9: #{tpu_custom_call.1} parent=5 // pred_check
        _
      $region10: #{tpu_custom_call.1} parent=5 // pred_check_branch
        %135 = sbr.rel (%p132) target = $region12
      $region11: #{tpu_custom_call.1} parent=5 // pred_region
        %s136 = ssub.s32 %s18, 1
      $region12: #{tpu_custom_call.1} parent=5 // pred_fallthru
        _
      %p137 = scmp.lt.s32.totalorder %s18, 2
      // Predicated region
      $region13: #{tpu_custom_call.1} parent=5 // pred_check
        %p138 = pneg %p137
      $region14: #{tpu_custom_call.1} parent=5 // pred_check_branch
        %140 = sbr.rel (%p138) target = $region16
      $region15: #{tpu_custom_call.1} parent=5 // pred_region
        // Predicated region
        $region17: #{tpu_custom_call.1} parent=15 // pred_check
          %p141 = pneg %p38
        $region18: #{tpu_custom_call.1} parent=15 // pred_check_branch
          %143 = sbr.rel (%p141) target = $region20
        $region19: #{tpu_custom_call.1} parent=15 // pred_region
          %s144 = sand.u32 %s28, 1
          %s145 = scalar_lea.sflag [#allocation3], %s144
          %s146 = sand.u32 %s28, 1
          %s147 = smul.addr %s146, 8
          %s148 = scalar_lea.vmem [#allocation2], %s147
          %s150 = ssub.s32 128, 128
          %151 = vsyncadd %s145, %s150
          %s152 = smul.addr %s18, 2
          %s153 = smul.addr %s152, 64
          %s154 = scalar_lea.hbm %s0, %s153
          %s156 = sshll.u32 %s148, 4
          %s157 = int_to_ptr.vmem [resolvable:$true] %s156
          %159 = dma.hbm_to_vmem [thread:$0]  %s154, 128, %s157, %s145
        $region20: #{tpu_custom_call.1} parent=15 // pred_fallthru
          _
        // Predicated region
        $region21: #{tpu_custom_call.1} parent=15 // pred_check
          %p160 = pneg %p64
        $region22: #{tpu_custom_call.1} parent=15 // pred_check_branch
          %162 = sbr.rel (%p160) target = $region24
        $region23: #{tpu_custom_call.1} parent=15 // pred_region
          %s163 = sand.u32 %s18, 1
          %s164 = scalar_lea.sflag [#allocation6], %s163
          %s165 = sand.u32 %s54, 1
          %s166 = smul.addr %s165, 8
          %s167 = scalar_lea.vmem [#allocation5], %s166
          %s169 = ssub.s32 128, 128
          %170 = vsyncadd %s164, %s169
          %s171 = smul.addr %s18, 2
          %s172 = smul.addr %s171, 64
          %s173 = scalar_lea.hbm %s1, %s172
          %s175 = sshll.u32 %s167, 4
          %s176 = int_to_ptr.vmem [resolvable:$true] %s175
          %178 = dma.hbm_to_vmem [thread:$0]  %s173, 128, %s176, %s164
        $region24: #{tpu_custom_call.1} parent=15 // pred_fallthru
          _
        // Predicated region
        $region25: #{tpu_custom_call.1} parent=15 // pred_check
          %p179 = pneg %p90
        $region26: #{tpu_custom_call.1} parent=15 // pred_check_branch
          %181 = sbr.rel (%p179) target = $region28
        $region27: #{tpu_custom_call.1} parent=15 // pred_region
          %s182 = sand.u32 %s18, 1
          %s183 = scalar_lea.sflag [#allocation6], %s182
          %s184 = sand.u32 %s80, 1
          %s185 = smul.addr %s184, 8
          %s186 = scalar_lea.vmem [#allocation7], %s185
          %s188 = ssub.s32 128, 128
          %189 = vsyncadd %s183, %s188
          %s190 = smul.addr %s18, 2
          %s191 = smul.addr %s190, 64
          %s192 = scalar_lea.hbm %s2, %s191
          %s194 = sshll.u32 %s186, 4
          %s195 = int_to_ptr.vmem [resolvable:$true] %s194
          %197 = dma.hbm_to_vmem [thread:$0]  %s192, 128, %s195, %s183
        $region28: #{tpu_custom_call.1} parent=15 // pred_fallthru
          _
      $region16: #{tpu_custom_call.1} parent=5 // pred_fallthru
        _
      %p198 = scmp.le.s32.totalorder 1, %s18
      %p199 = scmp.lt.s32.totalorder %s18, 3
      %p200 = pnand %p198, %p199
      %p201 = pneg %p200
      // Predicated region
      $region29: #{tpu_custom_call.1} parent=5 // pred_check
        _
      $region30: #{tpu_custom_call.1} parent=5 // pred_check_branch
        %203 = sbr.rel (%p200) target = $region32
      $region31: #{tpu_custom_call.1} parent=5 // pred_region
        %s204 = ssub.s32 %s18, 1
        %s205 = sand.u32 %s31, 1
        %s206 = scalar_lea.sflag [#allocation3], %s205
        %s207 = sand.u32 %s31, 1
        %s208 = smul.addr %s207, 8
        %s209 = scalar_lea.vmem [#allocation2], %s208
        // Predicated region
        $region33: #{tpu_custom_call.1} parent=31 // pred_check
          %p210 = pneg %p44
        $region34: #{tpu_custom_call.1} parent=31 // pred_check_branch
          %212 = sbr.rel (%p210) target = $region36
        $region35: #{tpu_custom_call.1} parent=31 // pred_region
          %213 = dma.done %s206, 128
        $region36: #{tpu_custom_call.1} parent=31 // pred_fallthru
          _
        %s214 = sand.u32 %s23, 1
        %s215 = scalar_lea.sflag [#allocation6], %s214
        %s216 = sand.u32 %s57, 1
        %s217 = smul.addr %s216, 8
        %s218 = scalar_lea.vmem [#allocation5], %s217
        // Predicated region
        $region37: #{tpu_custom_call.1} parent=31 // pred_check
          %p219 = pneg %p70
        $region38: #{tpu_custom_call.1} parent=31 // pred_check_branch
          %221 = sbr.rel (%p219) target = $region40
        $region39: #{tpu_custom_call.1} parent=31 // pred_region
          %222 = dma.done %s215, 128
        $region40: #{tpu_custom_call.1} parent=31 // pred_fallthru
          _
        %s223 = sand.u32 %s23, 1
        %s224 = scalar_lea.sflag [#allocation6], %s223
        %s225 = sand.u32 %s83, 1
        %s226 = smul.addr %s225, 8
        %s227 = scalar_lea.vmem [#allocation7], %s226
        // Predicated region
        $region41: #{tpu_custom_call.1} parent=31 // pred_check
          %p228 = pneg %p96
        $region42: #{tpu_custom_call.1} parent=31 // pred_check_branch
          %230 = sbr.rel (%p228) target = $region44
        $region43: #{tpu_custom_call.1} parent=31 // pred_region
          %231 = dma.done %s224, 128
        $region44: #{tpu_custom_call.1} parent=31 // pred_fallthru
          _
        %s232 = sand.u32 %s31, 1
        %s233 = scalar_lea.sflag [#allocation3], %s232
        %s234 = sand.u32 %s31, 1
        %s235 = smul.addr %s234, 8
        %s236 = scalar_lea.vmem [#allocation2], %s235
        %p237 = pneg %p44
        %p238 = pneg %p41
        %s239 = sand.u32 %s23, 1
        %s240 = scalar_lea.sflag [#allocation6], %s239
        %s241 = sand.u32 %s57, 1
        %s242 = smul.addr %s241, 8
        %s243 = scalar_lea.vmem [#allocation5], %s242
        %p244 = pneg %p70
        %p245 = pneg %p67
        %s246 = sand.u32 %s23, 1
        %s247 = scalar_lea.sflag [#allocation6], %s246
        %s248 = sand.u32 %s83, 1
        %s249 = smul.addr %s248, 8
        %s250 = scalar_lea.vmem [#allocation7], %s249
        %p251 = pneg %p96
        %p252 = pneg %p93
        %p253 = pneg %p122
        %p254 = pneg %p119
        %s255 = sand.u32 %s109, 1
        %s256 = scalar_lea.sflag [#allocation4], %s255
        %s257 = sand.u32 %s109, 1
        %s258 = smul.addr %s257, 24
        %s259 = scalar_lea.vmem [#allocation8], %s258
        %v260 = vld [vmem:[%s209] sm:$0xff]
        %v262 = vcombine.high %v260, %v260
        %vm264 = vcmask 1043456
        %v265 = vsel %vm264, %v260, 0.0
        %v266 = vsel %vm264, %v262, 0.0
        %v267 = vadd.f32 %v265, %v266
        %268 = vadd.xlane.f32.xlu0 %v267
        %v269 = vpop.xlane.xlu0 %268
        %v270 = vmul.f32 %v269, 0.00390625
        %v271 = vsel %vm264, %v260, -inf
        %v272 = vsel %vm264, %v262, -inf
        %v273 = vmax.f32 %v271, %v272
        %274 = vmax.xlane.f32.xlu0 %v273
        %v275 = vpop.xlane.xlu0 %274
        %v276 = vld [vmem:[%s218] sm:$0xff]
        %v278 = vcombine.high %v276, %v276
        %v280 = vsel %vm264, %v276, 0.0
        %v281 = vsel %vm264, %v278, 0.0
        %v282 = vadd.f32 %v280, %v281
        %283 = vadd.xlane.f32.xlu0 %v282
        %v284 = vpop.xlane.xlu0 %283
        %v285 = vmul.f32 %v284, 0.00390625
        %v286 = vsel %vm264, %v276, -inf
        %v287 = vsel %vm264, %v278, -inf
        %v288 = vmax.f32 %v286, %v287
        %289 = vmax.xlane.f32.xlu0 %v288
        %v290 = vpop.xlane.xlu0 %289
        %v291 = vld [vmem:[%s227] sm:$0xff]
        %v293 = vcombine.high %v291, %v291
        %v295 = vsel %vm264, %v291, 0.0
        %v296 = vsel %vm264, %v293, 0.0
        %v297 = vadd.f32 %v295, %v296
        %298 = vadd.xlane.f32.xlu0 %v297
        %v299 = vpop.xlane.xlu0 %298
        %v300 = vmul.f32 %v299, 0.00390625
        %v301 = vsel %vm264, %v291, -inf
        %v302 = vsel %vm264, %v293, -inf
        %v303 = vmax.f32 %v301, %v302
        %304 = vmax.xlane.f32.xlu0 %v303
        %v305 = vpop.xlane.xlu0 %304
        %v306 = vmul.f32 %v285, %v270
        %v307 = vmul.f32 %v290, %v275
        %v308 = vadd.f32 %v306, %v307
        %v309 = vsel %vm264, %v308, 0.0
        %v310 = vrot.slane %v309, 4
        %v311 = vadd.f32 %v309, %v310
        %v312 = vrot.slane %v311, 2
        %v313 = vadd.f32 %v311, %v312
        %v314 = vrot.slane %v313, 1
        %v315 = vadd.f32 %v313, %v314
        %v316 = vmul.f32 %v285, %v300
        %v317 = vmul.f32 %v290, %v305
        %v318 = vadd.f32 %v316, %v317
        %v319 = vsel %vm264, %v318, 0.0
        %v320 = vrot.slane %v319, 4
        %v321 = vadd.f32 %v319, %v320
        %v322 = vrot.slane %v321, 2
        %v323 = vadd.f32 %v321, %v322
        %v324 = vrot.slane %v323, 1
        %v325 = vadd.f32 %v323, %v324
        %v326 = vmul.f32 %v270, %v270
        %v327 = vmul.f32 %v275, %v275
        %v328 = vadd.f32 %v326, %v327
        %v329 = vsel %vm264, %v328, 0.0
        %v330 = vrot.slane %v329, 4
        %v331 = vadd.f32 %v329, %v330
        %v332 = vrot.slane %v331, 2
        %v333 = vadd.f32 %v331, %v332
        %v334 = vrot.slane %v333, 1
        %v335 = vadd.f32 %v333, %v334
        %v336 = vrsqrt.pop %v335
        %v337 = vmul.f32 %v335, %v336
        %vm338 = vcmp.eq.f32.partialorder %v335, inf
        %v339 = vsel %vm338, %v335, %v337
        %vm340 = vcmp.eq.f32.partialorder %v335, 0.0
        %v341 = vand.u32 %v335, 2147483648
        %v342 = vsel %vm340, %v341, %v339
        %v343 = vmax.f32 %v342, 1e-08
        %v344 = vmul.f32 %v285, %v285
        %v345 = vmul.f32 %v290, %v290
        %v346 = vadd.f32 %v344, %v345
        %v347 = vsel %vm264, %v346, 0.0
        %v348 = vrot.slane %v347, 4
        %v349 = vadd.f32 %v347, %v348
        %v350 = vrot.slane %v349, 2
        %v351 = vadd.f32 %v349, %v350
        %v352 = vrot.slane %v351, 1
        %v353 = vadd.f32 %v351, %v352
        %v354 = vrsqrt.pop %v353
        %v355 = vmul.f32 %v353, %v354
        %vm356 = vcmp.eq.f32.partialorder %v353, inf
        %v357 = vsel %vm356, %v353, %v355
        %vm358 = vcmp.eq.f32.partialorder %v353, 0.0
        %v359 = vand.u32 %v353, 2147483648
        %v360 = vsel %vm358, %v359, %v357
        %v361 = vmax.f32 %v360, 1e-08
        %v362 = vmul.f32 %v300, %v300
        %v363 = vmul.f32 %v305, %v305
        %v364 = vadd.f32 %v362, %v363
        %v365 = vsel %vm264, %v364, 0.0
        %v366 = vrot.slane %v365, 4
        %v367 = vadd.f32 %v365, %v366
        %v368 = vrot.slane %v367, 2
        %v369 = vadd.f32 %v367, %v368
        %v370 = vrot.slane %v369, 1
        %v371 = vadd.f32 %v369, %v370
        %v372 = vrsqrt.pop %v371
        %v373 = vmul.f32 %v371, %v372
        %vm374 = vcmp.eq.f32.partialorder %v371, inf
        %v375 = vsel %vm374, %v371, %v373
        %vm376 = vcmp.eq.f32.partialorder %v371, 0.0
        %v377 = vand.u32 %v371, 2147483648
        %v378 = vsel %vm376, %v377, %v375
        %v379 = vmax.f32 %v378, 1e-08
        %v380 = vmul.f32 %v361, %v343
        %v381 = vrcp.pop %v380
        %v382 = vmul.f32 %v315, %v381
        %v383 = vmul.f32 %v361, %v379
        %v384 = vrcp.pop %v383
        %v385 = vmul.f32 %v325, %v384
        %v386 = vmax.f32 %v382, 1.0
        %v387 = vmax.f32 %v386, %v385
        %v388 = vsub.f32 %v382, %v387
        %v389 = vmul.f32 %v388, 1.442695
        %v390 = vpow.pop %v389
        %v391 = vsub.f32 1.0, %v387
        %v392 = vmul.f32 %v391, 1.442695
        %v393 = vpow.pop %v392
        %v394 = vsub.f32 %v385, %v387
        %v395 = vmul.f32 %v394, 1.442695
        %v396 = vpow.pop %v395
        %v397 = vadd.f32 %v390, %v393
        %v398 = vadd.f32 %v397, %v396
        %v399 = vrcp.pop %v398
        %v400 = vmul.f32 %v390, %v399
        %v401 = vmul.f32 %v393, %v399
        %v402 = vmul.f32 %v396, %v399
        %v403 = vmul.f32 %v260, %v400
        %404 = vst [vmem:[%s259] sm:$0xff] %v403
        %v405 = vld [vmem:[%s218] sm:$0xff]
        %v406 = vmul.f32 %v405, %v401
        %s407 = scalar_lea.vmem %s259, 8 [#allocation8]
        %408 = vst [vmem:[%s407] sm:$0xff] %v406
        %v409 = vld [vmem:[%s227] sm:$0xff]
        %v410 = vmul.f32 %v409, %v402
        %s411 = scalar_lea.vmem %s259, 16 [#allocation8]
        %412 = vst [vmem:[%s411] sm:$0xff] %v410
        %s413 = sand.u32 %s109, 1
        %s414 = scalar_lea.sflag [#allocation4], %s413
        %s415 = sand.u32 %s109, 1
        %s416 = smul.addr %s415, 24
        %s417 = scalar_lea.vmem [#allocation8], %s416
        // Predicated region
        $region45: #{tpu_custom_call.1} parent=31 // pred_check
          %p418 = pneg %p119
        $region46: #{tpu_custom_call.1} parent=31 // pred_check_branch
          %420 = sbr.rel (%p418) target = $region48
        $region47: #{tpu_custom_call.1} parent=31 // pred_region
          %s422 = ssub.s32 384, 384
          %423 = vsyncadd %s414, %s422
          %s424 = smul.addr %s23, 6
          %s425 = smul.addr %s424, 64
          %s426 = scalar_lea.hbm %s3, %s425
          %s427 = sshll.u32 %s417, 4
          %s428 = int_to_ptr.vmem [resolvable:$true] %s427
          %433 = dma.vmem_to_hbm [thread:$0]  %s428, 384, %s426, %s414, 128, 128, 8
        $region48: #{tpu_custom_call.1} parent=31 // pred_fallthru
          _
      $region32: #{tpu_custom_call.1} parent=5 // pred_fallthru
        _
      %p434 = scmp.le.s32.totalorder 2, %s18
      // Predicated region
      $region49: #{tpu_custom_call.1} parent=5 // pred_check
        %p435 = pneg %p434
      $region50: #{tpu_custom_call.1} parent=5 // pred_check_branch
        %437 = sbr.rel (%p435) target = $region52
      $region51: #{tpu_custom_call.1} parent=5 // pred_region
        %s438 = ssub.s32 %s18, 2
        // Predicated region
        $region53: #{tpu_custom_call.1} parent=51 // pred_check
          %p439 = pneg %p125
        $region54: #{tpu_custom_call.1} parent=51 // pred_check_branch
          %441 = sbr.rel (%p439) target = $region56
        $region55: #{tpu_custom_call.1} parent=51 // pred_region
          %s442 = sand.u32 %s110, 1
          %s443 = scalar_lea.sflag [#allocation4], %s442
          %s444 = sand.u32 %s110, 1
          %s445 = smul.addr %s444, 24
          %s446 = scalar_lea.vmem [#allocation8], %s445
          %447 = dma.done %s443, 384
        $region56: #{tpu_custom_call.1} parent=51 // pred_fallthru
          _
      $region52: #{tpu_custom_call.1} parent=5 // pred_fallthru
        _
    $region6: #{tpu_custom_call.1} parent=1 // loop_footer
      %s22 = sadd.s32 1, %s18
    $region7: #{tpu_custom_call.1} parent=1 // loop_footer_branch
      %17 = sbr.rel target = $region3
    $region8: #{tpu_custom_call.1} parent=1 // loop_exit
      _
    %448 = vsyncpa [#allocation3], 1
    %s449 = scalar_lea.sflag [#allocation3], 1
    %450 = vsyncpa %s449, 1
    %451 = vsyncpa [#allocation6], 1
    %s452 = scalar_lea.sflag [#allocation6], 1
    %453 = vsyncpa %s452, 1
    %454 = vsyncpa [#allocation4], 1
    %s455 = scalar_lea.sflag [#allocation4], 1
    %456 = vsyncpa %s455, 1

</llo_original>
